<compile_context>
chip_gen: v6e
topology: v6e:2x2x1
jax: 0.10.0
libtpu: 0.0.40
codegen_flags: <defaults>
</compile_context>

<pallas_src>
import functools
import math

import jax
import jax.numpy as jnp
import numpy as np
from jax.experimental import pallas as pl
from jax.experimental.pallas import tpu as pltpu


# ---------------------------------------------------------------------------
# Pallas kernel: one (batch, head) tile per grid step.
#   grid = (B, H); H is a reduction ("arbitrary") axis for the output projection.
# ---------------------------------------------------------------------------
def _attention_kernel(x_ref, wqkv_ref, wo_ref, cos_ref, sin_ref, o_ref, acc_ref):
    h = pl.program_id(1)
    T = x_ref.shape[1]
    hd = wo_ref.shape[1]
    half = hd // 2

    @pl.when(h == 0)
    def _init():
        acc_ref[...] = jnp.zeros_like(acc_ref)

    x = x_ref[0]                                            # (T, C) bf16

    # Fused per-head QKV projection: one MXU pass (softmax scale pre-folded in Wq).
    qkv = jnp.dot(x, wqkv_ref[0], preferred_element_type=jnp.float32)   # (T, 3*hd) f32
    q = qkv[:, :hd]
    k = qkv[:, hd:2 * hd]
    v = qkv[:, 2 * hd:]

    cos = cos_ref[...]                                      # (T, half) f32
    sin = sin_ref[...]                                      # (T, half) f32

    def rope(t):                                            # t: (T, hd) = [re | im]
        re = t[:, :half]
        im = t[:, half:]
        # TODO(synk): for lane-dense head dims (hd multiple of 128) replace the
        # slice+concat with pltpu.roll(t, half, axis=-1) and [cos|cos]/[-sin|sin]
        # tables (XLU slot, no relayout).
        return jnp.concatenate([re * cos - im * sin, re * sin + im * cos], axis=-1)

    qr = rope(q).astype(jnp.bfloat16)                       # (T, hd)
    kr = rope(k).astype(jnp.bfloat16)                       # (T, hd)

    # Causal SDPA for this head. Scale is already folded into qr via Wq.
    s = jnp.dot(qr, kr.T, preferred_element_type=jnp.float32)           # (T, T)
    row = jax.lax.broadcasted_iota(jnp.int32, (T, T), 0)
    col = jax.lax.broadcasted_iota(jnp.int32, (T, T), 1)
    s = jnp.where(row >= col, s, -1e30)

    m = jnp.max(s, axis=-1, keepdims=True)
    p = jnp.exp(s - m)
    p = p * pl.reciprocal(jnp.sum(p, axis=-1, keepdims=True), approx=True)

    y = jnp.dot(p.astype(jnp.bfloat16), v.astype(jnp.bfloat16),
                preferred_element_type=jnp.float32)                      # (T, hd)

    # Per-head slice of the output projection, accumulated over the H grid axis.
    acc_ref[...] += jnp.dot(y.astype(jnp.bfloat16), wo_ref[0],
                            preferred_element_type=jnp.float32)          # (T, C)

    @pl.when(h == pl.num_programs(1) - 1)
    def _finalize():
        o_ref[0] = acc_ref[...]

    # TODO(synk): attn/residual dropout omitted (eval-mode forward, dropout_p = 0).
    # TODO(synk): for long sequences (T >= ~1k) tile the query dim on the grid and
    # run an online-softmax (flash) loop over KV tiles instead of the full (T, T)
    # score matrix; projections should then be hoisted to a separate kernel.


# ---------------------------------------------------------------------------
# Wrapper: parameter plumbing + pallas_call
# ---------------------------------------------------------------------------
def attention_forward(x, wq, wk, wv, wo, cos, sin, n_heads):
    """x: (B,T,C) f32; wq/wk/wv/wo: (C,C) torch nn.Linear layout (out,in); cos/sin: (T, hd//2)."""
    B, T, C = x.shape
    H = n_heads
    hd = C // H
    half = hd // 2
    scale = 1.0 / math.sqrt(hd)

    # Per-head permutation: interleaved (re0,im0,re1,im1,...) -> [re0..re_{h-1} | im0..im_{h-1}]
    perm = np.concatenate([
        np.concatenate([h * hd + np.arange(0, hd, 2), h * hd + np.arange(1, hd, 2)])
        for h in range(H)
    ])

    wq_t = (jnp.asarray(wq).T * scale)[:, perm]     # softmax scale folded into Wq
    wk_t = jnp.asarray(wk).T[:, perm]
    wv_t = jnp.asarray(wv).T

    # Fused per-head QKV weight: (H, C, 3*hd), bf16 for the MXU.
    wqkv = jnp.stack(
        [jnp.concatenate([wq_t[:, h * hd:(h + 1) * hd],
                          wk_t[:, h * hd:(h + 1) * hd],
                          wv_t[:, h * hd:(h + 1) * hd]], axis=1)
         for h in range(H)], axis=0).astype(jnp.bfloat16)

    # Output projection split per head: (H, hd, C), bf16.
    wo_heads = jnp.asarray(wo).T.reshape(H, hd, C).astype(jnp.bfloat16)

    x_bf = jnp.asarray(x).astype(jnp.bfloat16)
    cos = jnp.asarray(cos, dtype=jnp.float32)
    sin = jnp.asarray(sin, dtype=jnp.float32)

    flops = int(
        2 * B * T * C * 3 * C          # fused QKV projections
        + 4 * B * H * T * T * hd       # q@k.T and p@v
        + 2 * B * T * C * C            # output projection
        + 8 * B * T * C)               # RoPE elementwise
    cost = pl.CostEstimate(
        flops=flops,
        transcendentals=int(B * H * T * T),                 # exp in softmax
        bytes_accessed=int(x_bf.size * 2 + B * (wqkv.size * 2 + wo_heads.size * 2)
                           + (cos.size + sin.size) * 4 + B * T * C * 4))

    return pl.pallas_call(
        _attention_kernel,
        out_shape=jax.ShapeDtypeStruct((B, T, C), jnp.float32),
        grid=(B, H),
        in_specs=[
            pl.BlockSpec((1, T, C), lambda b, h: (b, 0, 0)),        # x (one batch, shared across heads)
            pl.BlockSpec((1, C, 3 * hd), lambda b, h: (h, 0, 0)),   # fused per-head [Wq|Wk|Wv]
            pl.BlockSpec((1, hd, C), lambda b, h: (h, 0, 0)),       # per-head slice of Wo
            pl.BlockSpec((T, half), lambda b, h: (0, 0)),           # cos
            pl.BlockSpec((T, half), lambda b, h: (0, 0)),           # sin
        ],
        out_specs=pl.BlockSpec((1, T, C), lambda b, h: (b, 0, 0)),
        scratch_shapes=[pltpu.VMEM((T, C), jnp.float32)],           # out-proj accumulator
        compiler_params=pltpu.CompilerParams(
            dimension_semantics=("parallel", "arbitrary"),
            vmem_limit_bytes=32 * 1024 * 1024,   # raise for large C / long T configs
        ),
        cost_estimate=cost,
    )(x_bf, wqkv, wo_heads, cos, sin)


# ---------------------------------------------------------------------------
# Pure-JAX f32 reference (mirrors the PyTorch forward exactly, eval mode)
# ---------------------------------------------------------------------------
def _rope_ref(x, cos, sin):
    # x: (B, H, T, hd) -- interleaved (re, im) pairs on the last dim, like view_as_complex.
    B, H, T, hd = x.shape
    xr = x.reshape(B, H, T, hd // 2, 2)
    re, im = xr[..., 0], xr[..., 1]
    c = cos[None, None, :, :]
    s = sin[None, None, :, :]
    out = jnp.stack([re * c - im * s, re * s + im * c], axis=-1)
    return out.reshape(B, H, T, hd)


def _ref_forward(x, wq, wk, wv, wo, cos, sin, n_heads):
    B, T, C = x.shape
    hd = C // n_heads
    q = (x @ wq.T).reshape(B, T, n_heads, hd).transpose(0, 2, 1, 3)
    k = (x @ wk.T).reshape(B, T, n_heads, hd).transpose(0, 2, 1, 3)
    v = (x @ wv.T).reshape(B, T, n_heads, hd).transpose(0, 2, 1, 3)
    q = _rope_ref(q, cos, sin)
    k = _rope_ref(k, cos, sin)
    s = jnp.einsum("bhtd,bhsd->bhts", q, k) / math.sqrt(hd)
    mask = jnp.tril(jnp.ones((T, T), dtype=bool))
    s = jnp.where(mask[None, None], s, -jnp.inf)
    p = jax.nn.softmax(s, axis=-1)
    y = jnp.einsum("bhts,bhsd->bhtd", p, v)
    y = y.transpose(0, 2, 1, 3).reshape(B, T, C)
    return y @ wo.T


# ---------------------------------------------------------------------------
if __name__ == "__main__":
    # ModelArgs-equivalent small config
    B, T, emb_dim, n_heads = 2, 16, 64, 4
    hd = emb_dim // n_heads

    key = jax.random.PRNGKey(0)
    kx, kq, kk, kv, ko = jax.random.split(key, 5)

    x = jax.random.normal(kx, (B, T, emb_dim), dtype=jnp.float32)

    # Deterministic nn.Linear-style init (uniform +/- 1/sqrt(fan_in)), shape (out, in).
    bound = 1.0 / math.sqrt(emb_dim)
    wq = jax.random.uniform(kq, (emb_dim, emb_dim), jnp.float32, -bound, bound)
    wk = jax.random.uniform(kk, (emb_dim, emb_dim), jnp.float32, -bound, bound)
    wv = jax.random.uniform(kv, (emb_dim, emb_dim), jnp.float32, -bound, bound)
    wo = jax.random.uniform(ko, (emb_dim, emb_dim), jnp.float32, -bound, bound)

    # Rotary frequencies (freqs_complex equivalent): shape (T, hd//2), as cos/sin.
    inv_freq = 1.0 / (10000.0 ** (np.arange(0, hd, 2, dtype=np.float32) / hd))  # (hd//2,)
    angles = np.outer(np.arange(T, dtype=np.float32), inv_freq)                 # (T, hd//2)
    cos = jnp.asarray(np.cos(angles), dtype=jnp.float32)
    sin = jnp.asarray(np.sin(angles), dtype=jnp.float32)

    out = attention_forward(x, wq, wk, wv, wo, cos, sin, n_heads)
    out = jax.block_until_ready(out)

    ref = _ref_forward(x, wq, wk, wv, wo, cos, sin, n_heads)
    # Tolerance loosened vs. the pure-f32 reference: MXU matmuls run in bf16
    # (f32 accumulation) and the softmax normalizer uses the approx EUP reciprocal.
    np.testing.assert_allclose(np.asarray(out), np.asarray(ref), rtol=3e-2, atol=3e-2)

    print("KERNEL_OK")
</pallas_src>

<mosaic_0001>
module attributes {stable_mosaic.version = 11 : i64} {
  func.func @_attention_kernel(%arg0: i32, %arg1: i32, %arg2: memref<1x16x64xbf16, #tpu.memory_space<vmem>>, %arg3: memref<1x64x48xbf16, #tpu.memory_space<vmem>>, %arg4: memref<1x16x64xbf16, #tpu.memory_space<vmem>>, %arg5: memref<16x8xf32, #tpu.memory_space<vmem>>, %arg6: memref<16x8xf32, #tpu.memory_space<vmem>>, %arg7: memref<1x16x64xf32, #tpu.memory_space<vmem>>, %arg8: memref<16x64xf32, #tpu.memory_space<vmem>>) attributes {dimension_semantics = [#tpu.dimension_semantics<parallel>, #tpu.dimension_semantics<arbitrary>], iteration_bounds = array<i64: 2, 4>, scalar_prefetch = 0 : i64, scratch_operands = 1 : i64, tpu.core_type = #tpu.core_type<tc>, window_params = [{transform_indices = @transform_0, window_bounds = array<i64: 1, 16, 64>}, {transform_indices = @transform_1, window_bounds = array<i64: 1, 64, 48>}, {transform_indices = @transform_2, window_bounds = array<i64: 1, 16, 64>}, {pipeline_mode = #tpu.pipeline_mode<synchronous>, transform_indices = @transform_3, window_bounds = array<i64: 16, 8>}, {pipeline_mode = #tpu.pipeline_mode<synchronous>, transform_indices = @transform_4, window_bounds = array<i64: 16, 8>}, {transform_indices = @transform_5, window_bounds = array<i64: 1, 16, 64>}]} {
    %c0_i32 = arith.constant 0 : i32
    %0 = arith.cmpi eq, %arg1, %c0_i32 : i32
    %1 = arith.extui %0 : i1 to i32
    %c0_i32_0 = arith.constant 0 : i32
    %2 = arith.cmpi ne, %1, %c0_i32_0 : i32
    scf.if %2 {
      %cst_24 = arith.constant 0.000000e+00 : f32
      %63 = vector.broadcast %cst_24 : f32 to vector<16x64xf32>
      %c0_25 = arith.constant 0 : index
      %c0_26 = arith.constant 0 : index
      %64 = vector.load %arg8[%c0_25, %c0_26] : memref<16x64xf32, #tpu.memory_space<vmem>>, vector<16x64xf32>
      tpu.vector_store %arg8[%c0_25, %c0_26], %63 {strides = array<i32>} : memref<16x64xf32, #tpu.memory_space<vmem>>, vector<16x64xf32>,
    } else {
    }
    %c0 = arith.constant 0 : index
    %c0_1 = arith.constant 0 : index
    %c0_2 = arith.constant 0 : index
    %3 = vector.load %arg2[%c0, %c0_1, %c0_2] : memref<1x16x64xbf16, #tpu.memory_space<vmem>>, vector<1x16x64xbf16>
    %4 = vector.shape_cast %3 : vector<1x16x64xbf16> to vector<16x64xbf16>
    %c0_3 = arith.constant 0 : index
    %c0_4 = arith.constant 0 : index
    %c0_5 = arith.constant 0 : index
    %5 = vector.load %arg3[%c0_3, %c0_4, %c0_5] : memref<1x64x48xbf16, #tpu.memory_space<vmem>>, vector<1x64x48xbf16>
    %6 = vector.shape_cast %5 : vector<1x64x48xbf16> to vector<64x48xbf16>
    %cst = arith.constant dense<0.000000e+00> : vector<16x48xf32>
    %7 = tpu.matmul %4, %6, %cst {dimension_numbers = #tpu.dot_dimension_numbers<[1], [0], [0], [1], [0, 0, 1, 1], [], []>} : vector<16x64xbf16>, vector<64x48xbf16>, vector<16x48xf32> -> vector<16x48xf32>
    %8 = vector.extract_strided_slice %7 {offsets = [0, 0], sizes = [16, 16], strides = [1, 1]} : vector<16x48xf32> to vector<16x16xf32>
    %9 = vector.extract_strided_slice %7 {offsets = [0, 16], sizes = [16, 16], strides = [1, 1]} : vector<16x48xf32> to vector<16x16xf32>
    %10 = vector.extract_strided_slice %7 {offsets = [0, 32], sizes = [16, 16], strides = [1, 1]} : vector<16x48xf32> to vector<16x16xf32>
    %c0_6 = arith.constant 0 : index
    %c0_7 = arith.constant 0 : index
    %11 = vector.load %arg5[%c0_6, %c0_7] : memref<16x8xf32, #tpu.memory_space<vmem>>, vector<16x8xf32>
    %c0_8 = arith.constant 0 : index
    %c0_9 = arith.constant 0 : index
    %12 = vector.load %arg6[%c0_8, %c0_9] : memref<16x8xf32, #tpu.memory_space<vmem>>, vector<16x8xf32>
    %13 = vector.extract_strided_slice %8 {offsets = [0, 0], sizes = [16, 8], strides = [1, 1]} : vector<16x16xf32> to vector<16x8xf32>
    %14 = vector.extract_strided_slice %8 {offsets = [0, 8], sizes = [16, 8], strides = [1, 1]} : vector<16x16xf32> to vector<16x8xf32>
    %15 = arith.mulf %13, %11 : vector<16x8xf32>
    %16 = arith.mulf %14, %12 : vector<16x8xf32>
    %17 = arith.subf %15, %16 : vector<16x8xf32>
    %18 = arith.mulf %13, %12 : vector<16x8xf32>
    %19 = arith.mulf %14, %11 : vector<16x8xf32>
    %20 = arith.addf %18, %19 : vector<16x8xf32>
    %21 = tpu.concatenate %17, %20 in 1 : vector<16x8xf32>, vector<16x8xf32> -> vector<16x16xf32>
    %22 = arith.truncf %21 : vector<16x16xf32> to vector<16x16xbf16>
    %23 = vector.extract_strided_slice %9 {offsets = [0, 0], sizes = [16, 8], strides = [1, 1]} : vector<16x16xf32> to vector<16x8xf32>
    %24 = vector.extract_strided_slice %9 {offsets = [0, 8], sizes = [16, 8], strides = [1, 1]} : vector<16x16xf32> to vector<16x8xf32>
    %25 = arith.mulf %23, %11 : vector<16x8xf32>
    %26 = arith.mulf %24, %12 : vector<16x8xf32>
    %27 = arith.subf %25, %26 : vector<16x8xf32>
    %28 = arith.mulf %23, %12 : vector<16x8xf32>
    %29 = arith.mulf %24, %11 : vector<16x8xf32>
    %30 = arith.addf %28, %29 : vector<16x8xf32>
    %31 = tpu.concatenate %27, %30 in 1 : vector<16x8xf32>, vector<16x8xf32> -> vector<16x16xf32>
    %32 = arith.truncf %31 : vector<16x16xf32> to vector<16x16xbf16>
    %33 = tpu.transpose %32, [1, 0] : vector<16x16xbf16> -> vector<16x16xbf16>
    %cst_10 = arith.constant dense<0.000000e+00> : vector<16x16xf32>
    %34 = tpu.matmul %22, %33, %cst_10 {dimension_numbers = #tpu.dot_dimension_numbers<[1], [0], [0], [1], [0, 0, 1, 1], [], []>} : vector<16x16xbf16>, vector<16x16xbf16>, vector<16x16xf32> -> vector<16x16xf32>
    %35 = tpu.iota {dimensions = array<i32: 0>} : vector<16x16xi32>
    %36 = tpu.iota {dimensions = array<i32: 1>} : vector<16x16xi32>
    %37 = arith.cmpi sge, %35, %36 : vector<16x16xi32>
    %cst_11 = arith.constant -1.000000e+30 : f32
    %38 = vector.broadcast %cst_11 : f32 to vector<16x16xf32>
    %39 = arith.select %37, %34, %38 : vector<16x16xi1>, vector<16x16xf32>
    %cst_12 = arith.constant dense<0xFF800000> : vector<16xf32>
    %40 = vector.multi_reduction <maximumf>, %39, %cst_12 [1] : vector<16x16xf32> to vector<16xf32>
    %41 = vector.shape_cast %40 : vector<16xf32> to vector<16x1xf32>
    %42 = vector.broadcast %41 : vector<16x1xf32> to vector<16x16xf32>
    %43 = arith.subf %39, %42 : vector<16x16xf32>
    %44 = math.exp %43 : vector<16x16xf32>
    %cst_13 = arith.constant dense<0.000000e+00> : vector<16xf32>
    %45 = vector.multi_reduction <add>, %44, %cst_13 [1] : vector<16x16xf32> to vector<16xf32>
    %46 = vector.shape_cast %45 : vector<16xf32> to vector<16x1xf32>
    %47 = tpu.reciprocal %46 {approx = true} : vector<16x1xf32> -> vector<16x1xf32>
    %48 = vector.broadcast %47 : vector<16x1xf32> to vector<16x16xf32>
    %49 = arith.mulf %44, %48 : vector<16x16xf32>
    %50 = arith.truncf %49 : vector<16x16xf32> to vector<16x16xbf16>
    %51 = arith.truncf %10 : vector<16x16xf32> to vector<16x16xbf16>
    %cst_14 = arith.constant dense<0.000000e+00> : vector<16x16xf32>
    %52 = tpu.matmul %50, %51, %cst_14 {dimension_numbers = #tpu.dot_dimension_numbers<[1], [0], [0], [1], [0, 0, 1, 1], [], []>} : vector<16x16xbf16>, vector<16x16xbf16>, vector<16x16xf32> -> vector<16x16xf32>
    %c0_15 = arith.constant 0 : index
    %c0_16 = arith.constant 0 : index
    %53 = vector.load %arg8[%c0_15, %c0_16] : memref<16x64xf32, #tpu.memory_space<vmem>>, vector<16x64xf32>
    %54 = arith.truncf %52 : vector<16x16xf32> to vector<16x16xbf16>
    %c0_17 = arith.constant 0 : index
    %c0_18 = arith.constant 0 : index
    %c0_19 = arith.constant 0 : index
    %55 = vector.load %arg4[%c0_17, %c0_18, %c0_19] : memref<1x16x64xbf16, #tpu.memory_space<vmem>>, vector<1x16x64xbf16>
    %56 = vector.shape_cast %55 : vector<1x16x64xbf16> to vector<16x64xbf16>
    %cst_20 = arith.constant dense<0.000000e+00> : vector<16x64xf32>
    %57 = tpu.matmul %54, %56, %cst_20 {dimension_numbers = #tpu.dot_dimension_numbers<[1], [0], [0], [1], [0, 0, 1, 1], [], []>} : vector<16x16xbf16>, vector<16x64xbf16>, vector<16x64xf32> -> vector<16x64xf32>
    %58 = arith.addf %53, %57 : vector<16x64xf32>
    %c0_21 = arith.constant 0 : index
    %c0_22 = arith.constant 0 : index
    %59 = vector.load %arg8[%c0_21, %c0_22] : memref<16x64xf32, #tpu.memory_space<vmem>>, vector<16x64xf32>
    tpu.vector_store %arg8[%c0_21, %c0_22], %58 {strides = array<i32>} : memref<16x64xf32, #tpu.memory_space<vmem>>, vector<16x64xf32>,
    %c3_i32 = arith.constant 3 : i32
    %60 = arith.cmpi eq, %arg1, %c3_i32 : i32
    %61 = arith.extui %60 : i1 to i32
    %c0_i32_23 = arith.constant 0 : i32
    %62 = arith.cmpi ne, %61, %c0_i32_23 : i32
    scf.if %62 {
      %c0_24 = arith.constant 0 : index
      %c0_25 = arith.constant 0 : index
      %63 = vector.load %arg8[%c0_24, %c0_25] : memref<16x64xf32, #tpu.memory_space<vmem>>, vector<16x64xf32>
      %c0_26 = arith.constant 0 : index
      %c0_27 = arith.constant 0 : index
      %c0_28 = arith.constant 0 : index
      %64 = vector.load %arg7[%c0_26, %c0_27, %c0_28] : memref<1x16x64xf32, #tpu.memory_space<vmem>>, vector<1x16x64xf32>
      %65 = vector.shape_cast %64 : vector<1x16x64xf32> to vector<16x64xf32>
      %66 = vector.shape_cast %63 : vector<16x64xf32> to vector<1x16x64xf32>
      tpu.vector_store %arg7[%c0_26, %c0_27, %c0_28], %66 {strides = array<i32>} : memref<1x16x64xf32, #tpu.memory_space<vmem>>, vector<1x16x64xf32>,
    } else {
    }
    return
  }
  func.func @transform_0(%arg0: i32, %arg1: i32) -> (i32, i32, i32) {
    %c0_i32 = arith.constant 0 : i32
    %c0_i32_0 = arith.constant 0 : i32
    %c0_i32_1 = arith.constant 0 : i32
    return %arg0, %c0_i32, %c0_i32_0 : i32, i32, i32
  }
  func.func @transform_1(%arg0: i32, %arg1: i32) -> (i32, i32, i32) {
    %c0_i32 = arith.constant 0 : i32
    %c0_i32_0 = arith.constant 0 : i32
    %c0_i32_1 = arith.constant 0 : i32
    return %arg1, %c0_i32, %c0_i32_0 : i32, i32, i32
  }
  func.func @transform_2(%arg0: i32, %arg1: i32) -> (i32, i32, i32) {
    %c0_i32 = arith.constant 0 : i32
    %c0_i32_0 = arith.constant 0 : i32
    %c0_i32_1 = arith.constant 0 : i32
    return %arg1, %c0_i32, %c0_i32_0 : i32, i32, i32
  }
  func.func @transform_3(%arg0: i32, %arg1: i32) -> (i32, i32) {
    %c0_i32 = arith.constant 0 : i32
    %c0_i32_0 = arith.constant 0 : i32
    %c0_i32_1 = arith.constant 0 : i32
    return %c0_i32, %c0_i32_0 : i32, i32
  }
  func.func @transform_4(%arg0: i32, %arg1: i32) -> (i32, i32) {
    %c0_i32 = arith.constant 0 : i32
    %c0_i32_0 = arith.constant 0 : i32
    %c0_i32_1 = arith.constant 0 : i32
    return %c0_i32, %c0_i32_0 : i32, i32
  }
  func.func @transform_5(%arg0: i32, %arg1: i32) -> (i32, i32, i32) {
    %c0_i32 = arith.constant 0 : i32
    %c0_i32_0 = arith.constant 0 : i32
    %c0_i32_1 = arith.constant 0 : i32
    return %arg0, %c0_i32, %c0_i32_0 : i32, i32, i32
  }
}

</mosaic_0001>

<llo_original>
// kernel: tpu_custom_call.1
$region0: #{tpu_custom_call.1}
  #allocation0 [shape = 'u32[]', space=smem, size = 0x4, offset = 0x4, fixed_abs, tag = 'smem constant byte address 0x4 - core index']
  #allocation1 [shape = 'u32[144,128]{1,0:T(1,128)}', space=vmem, size = 0x12000, scoped, tag = 'internal scratch']
  #allocation2 [shape = 'f32[16,64]{1,0:T(8,128)}', space=vmem, size = 0x2000, scoped, tag = 'scratch operand']
  %s0 = inlined_call_operand.vmem [shape: bf16[2,16,64], index: 0, kind: input, shape index: {}]
  %s1 = inlined_call_operand.vmem [shape: bf16[4,64,48], index: 1, kind: input, shape index: {}]
  %s2 = inlined_call_operand.vmem [shape: bf16[4,16,64], index: 2, kind: input, shape index: {}]
  %s3 = inlined_call_operand.vmem [shape: f32[16,8], index: 3, kind: input, shape index: {}]
  %s4 = inlined_call_operand.vmem [shape: f32[16,8], index: 4, kind: input, shape index: {}]
  %s5 = inlined_call_operand.hbm [shape: f32[2,16,64], index: 5, kind: output, shape index: {}]
  %s6 = sld [smem:[#allocation0]]
  $region61: #{tpu_custom_call.1} parent=0
    _
  %s8 = ssub.s32 1, %s6
  %s9 = scalar_select 0, %s8, %s6
  $region1: #{tpu_custom_call.1} parent=0
    #allocation3 [shape = 'u8[16384]{0}', space=vmem, size = 0x4000, scoped, tag = 'output window, operand 0']
    #allocation4 [shape = 's32[2]{0}', space=sflag, size = 0x8, scoped, tag = 'scoped memory for tpu_custom_call.1']
    %10 = vsyncpa [#allocation4], 0
    %s11 = scalar_lea.sflag [#allocation4], 1
    %12 = vsyncpa %s11, 0
    loop: start=0, step=1, limit=10
    $region2: #{tpu_custom_call.1} parent=1 // loop_pre_header
      _
    $region3: #{tpu_custom_call.1} parent=1 // loop_header
      %s14 = sphi 0, %s18
      %p15 = scmp.ge.s32.totalorder %s14, 10
      %s21 = sphi 0, %s33
      %s22 = sphi 0, %s29
      %s23 = sphi 0, %s21
      %s24 = sphi 0, %s22
      %s25 = sphi 0, %s23
      %s26 = sphi 0, %s24
      %s36 = sphi 0, %s38
      %s39 = sphi 0, %s36
      %s40 = sphi 0, %s39
      %s56 = sphi 0, %s40
      %s62 = sphi 0, %s64
      %s65 = sphi 0, %s62
      %s66 = sphi 0, %s65
      %s82 = sphi 0, %s66
      %s88 = sphi 0, %s90
      %s91 = sphi 0, %s88
      %s92 = sphi 0, %s91
      %s108 = sphi 0, %s92
      %s112 = sphi 0, %s112
      %s114 = sphi 0, %s112
      %s115 = sphi 0, %s114
      %s129 = sphi 0, %s115
      %s133 = sphi 0, %s133
      %s135 = sphi 0, %s133
      %s136 = sphi 0, %s135
      %s150 = sphi 0, %s136
      %s156 = sphi 0, %s158
      %s159 = sphi 0, %s156
      %s160 = sphi 0, %s159
      %s176 = sphi 0, %s160
    $region4: #{tpu_custom_call.1} parent=1 // loop_header_branch
      %17 = sbr.rel (%p15) target = $region8
    $region5: #{tpu_custom_call.1} parent=1 // loop_body
      %s19 = ssub.s32 %s14, 1
      %s20 = ssub.s32 %s14, 2
      %s27 = sadd.s32 1, %s22
      %p28 = scmp.ge.s32.totalorder %s27, 4
      %s29 = scalar_select %p28, 0, %s27
      %s30 = sadd.s32 1, %s21
      %s31 = scalar_select %p28, %s30, %s21
      %p32 = scmp.ge.s32.totalorder %s31, 2
      %s33 = scalar_select %p32, 0, %s31
      %s34 = ssub.s32 %s21, %s33
      %p35 = scmp.eq.s32.totalorder %s34, 0
      %s37 = sadd.s32 %s36, 1
      %s38 = scalar_select %p35, %s36, %s37
      %p41 = pneg %p35
      %p42 = scmp.eq.s32.totalorder %s14, 7
      %p43 = por %p41, %p42
      %p44 = scmp.ne.s32.totalorder %s36, %s39
      %p45 = scmp.eq.s32.totalorder %s14, 0
      %p46 = por %p44, %p45
      %p47 = scmp.ne.s32.totalorder %s36, %s39
      %p48 = scmp.eq.s32.totalorder %s19, 7
      %p49 = por %p47, %p48
      %p50 = scmp.ne.s32.totalorder %s39, %s40
      %p51 = scmp.eq.s32.totalorder %s19, 0
      %p52 = por %p50, %p51
      %p53 = scmp.ne.s32.totalorder %s39, %s40
      %p54 = scmp.eq.s32.totalorder %s20, 7
      %p55 = por %p53, %p54
      %p57 = scmp.ne.s32.totalorder %s40, %s56
      %p58 = scmp.eq.s32.totalorder %s20, 0
      %p59 = por %p57, %p58
      %s60 = ssub.s32 %s22, %s29
      %p61 = scmp.eq.s32.totalorder %s60, 0
      %s63 = sadd.s32 %s62, 1
      %s64 = scalar_select %p61, %s62, %s63
      %p67 = pneg %p61
      %p68 = scmp.eq.s32.totalorder %s14, 7
      %p69 = por %p67, %p68
      %p70 = scmp.ne.s32.totalorder %s62, %s65
      %p71 = scmp.eq.s32.totalorder %s14, 0
      %p72 = por %p70, %p71
      %p73 = scmp.ne.s32.totalorder %s62, %s65
      %p74 = scmp.eq.s32.totalorder %s19, 7
      %p75 = por %p73, %p74
      %p76 = scmp.ne.s32.totalorder %s65, %s66
      %p77 = scmp.eq.s32.totalorder %s19, 0
      %p78 = por %p76, %p77
      %p79 = scmp.ne.s32.totalorder %s65, %s66
      %p80 = scmp.eq.s32.totalorder %s20, 7
      %p81 = por %p79, %p80
      %p83 = scmp.ne.s32.totalorder %s66, %s82
      %p84 = scmp.eq.s32.totalorder %s20, 0
      %p85 = por %p83, %p84
      %s86 = ssub.s32 %s22, %s29
      %p87 = scmp.eq.s32.totalorder %s86, 0
      %s89 = sadd.s32 %s88, 1
      %s90 = scalar_select %p87, %s88, %s89
      %p93 = pneg %p87
      %p94 = scmp.eq.s32.totalorder %s14, 7
      %p95 = por %p93, %p94
      %p96 = scmp.ne.s32.totalorder %s88, %s91
      %p97 = scmp.eq.s32.totalorder %s14, 0
      %p98 = por %p96, %p97
      %p99 = scmp.ne.s32.totalorder %s88, %s91
      %p100 = scmp.eq.s32.totalorder %s19, 7
      %p101 = por %p99, %p100
      %p102 = scmp.ne.s32.totalorder %s91, %s92
      %p103 = scmp.eq.s32.totalorder %s19, 0
      %p104 = por %p102, %p103
      %p105 = scmp.ne.s32.totalorder %s91, %s92
      %p106 = scmp.eq.s32.totalorder %s20, 7
      %p107 = por %p105, %p106
      %p109 = scmp.ne.s32.totalorder %s92, %s108
      %p110 = scmp.eq.s32.totalorder %s20, 0
      %p111 = por %p109, %p110
      %s113 = sadd.s32 %s112, 1
      %p116 = scmp.eq.s32.totalorder %s14, 7
      %p117 = scmp.ne.s32.totalorder %s112, %s114
      %p118 = scmp.eq.s32.totalorder %s14, 0
      %p119 = por %p117, %p118
      %p120 = scmp.ne.s32.totalorder %s112, %s114
      %p121 = scmp.eq.s32.totalorder %s19, 7
      %p122 = por %p120, %p121
      %p123 = scmp.ne.s32.totalorder %s114, %s115
      %p124 = scmp.eq.s32.totalorder %s19, 0
      %p125 = por %p123, %p124
      %p126 = scmp.ne.s32.totalorder %s114, %s115
      %p127 = scmp.eq.s32.totalorder %s20, 7
      %p128 = por %p126, %p127
      %p130 = scmp.ne.s32.totalorder %s115, %s129
      %p131 = scmp.eq.s32.totalorder %s20, 0
      %p132 = por %p130, %p131
      %s134 = sadd.s32 %s133, 1
      %p137 = scmp.eq.s32.totalorder %s14, 7
      %p138 = scmp.ne.s32.totalorder %s133, %s135
      %p139 = scmp.eq.s32.totalorder %s14, 0
      %p140 = por %p138, %p139
      %p141 = scmp.ne.s32.totalorder %s133, %s135
      %p142 = scmp.eq.s32.totalorder %s19, 7
      %p143 = por %p141, %p142
      %p144 = scmp.ne.s32.totalorder %s135, %s136
      %p145 = scmp.eq.s32.totalorder %s19, 0
      %p146 = por %p144, %p145
      %p147 = scmp.ne.s32.totalorder %s135, %s136
      %p148 = scmp.eq.s32.totalorder %s20, 7
      %p149 = por %p147, %p148
      %p151 = scmp.ne.s32.totalorder %s136, %s150
      %p152 = scmp.eq.s32.totalorder %s20, 0
      %p153 = por %p151, %p152
      %s154 = ssub.s32 %s21, %s33
      %p155 = scmp.eq.s32.totalorder %s154, 0
      %s157 = sadd.s32 %s156, 1
      %s158 = scalar_select %p155, %s156, %s157
      %p161 = pneg %p155
      %p162 = scmp.eq.s32.totalorder %s14, 7
      %p163 = por %p161, %p162
      %p164 = scmp.ne.s32.totalorder %s156, %s159
      %p165 = scmp.eq.s32.totalorder %s14, 0
      %p166 = por %p164, %p165
      %p167 = scmp.ne.s32.totalorder %s156, %s159
      %p168 = scmp.eq.s32.totalorder %s19, 7
      %p169 = por %p167, %p168
      %p170 = scmp.ne.s32.totalorder %s159, %s160
      %p171 = scmp.eq.s32.totalorder %s19, 0
      %p172 = por %p170, %p171
      %p173 = scmp.ne.s32.totalorder %s159, %s160
      %p174 = scmp.eq.s32.totalorder %s20, 7
      %p175 = por %p173, %p174
      %p177 = scmp.ne.s32.totalorder %s160, %s176
      %p178 = scmp.eq.s32.totalorder %s20, 0
      %p179 = por %p177, %p178
      %p180 = scmp.le.s32.totalorder 1, %s14
      %p181 = scmp.lt.s32.totalorder %s14, 9
      %p182 = pnand %p180, %p181
      %p183 = pneg %p182
      // Predicated region
      $region9: #{tpu_custom_call.1} parent=5 // pred_check
        _
      $region10: #{tpu_custom_call.1} parent=5 // pred_check_branch
        %185 = sbr.rel (%p182) target = $region12
      $region11: #{tpu_custom_call.1} parent=5 // pred_region
        %s186 = ssub.s32 %s14, 1
        // Predicated region
        $region13: #{tpu_custom_call.1} parent=11 // pred_check
          %p187 = pneg %p125
        $region14: #{tpu_custom_call.1} parent=11 // pred_check_branch
          %189 = sbr.rel (%p187) target = $region16
        $region15: #{tpu_custom_call.1} parent=11 // pred_region
          _
        $region16: #{tpu_custom_call.1} parent=11 // pred_fallthru
          _
        // Predicated region
        $region17: #{tpu_custom_call.1} parent=11 // pred_check
          %p190 = pneg %p146
        $region18: #{tpu_custom_call.1} parent=11 // pred_check_branch
          %192 = sbr.rel (%p190) target = $region20
        $region19: #{tpu_custom_call.1} parent=11 // pred_region
          _
        $region20: #{tpu_custom_call.1} parent=11 // pred_fallthru
          _
      $region12: #{tpu_custom_call.1} parent=5 // pred_fallthru
        _
      %p193 = scmp.lt.s32.totalorder %s14, 8
      // Predicated region
      $region21: #{tpu_custom_call.1} parent=5 // pred_check
        %p194 = pneg %p193
      $region22: #{tpu_custom_call.1} parent=5 // pred_check_branch
        %196 = sbr.rel (%p194) target = $region24
      $region23: #{tpu_custom_call.1} parent=5 // pred_region
        // Predicated region
        $region25: #{tpu_custom_call.1} parent=23 // pred_check
          %p197 = pneg %p46
        $region26: #{tpu_custom_call.1} parent=23 // pred_check_branch
          %199 = sbr.rel (%p197) target = $region28
        $region27: #{tpu_custom_call.1} parent=23 // pred_region
          %p200 = scmp.lt.s32.totalorder %s21, 1
          %s201 = scalar_select %p200, %s21, 1
          %s202 = smul.addr %s201, 2
          %s203 = smul.addr %s202, 4
          %s204 = scalar_lea.vmem %s0, %s203
        $region28: #{tpu_custom_call.1} parent=23 // pred_fallthru
          _
        // Predicated region
        $region29: #{tpu_custom_call.1} parent=23 // pred_check
          %p205 = pneg %p72
        $region30: #{tpu_custom_call.1} parent=23 // pred_check_branch
          %207 = sbr.rel (%p205) target = $region32
        $region31: #{tpu_custom_call.1} parent=23 // pred_region
          %p208 = scmp.lt.s32.totalorder %s22, 3
          %s209 = scalar_select %p208, %s22, 3
          %s210 = smul.addr %s209, 8
          %s211 = smul.addr %s210, 4
          %s212 = scalar_lea.vmem %s1, %s211
        $region32: #{tpu_custom_call.1} parent=23 // pred_fallthru
          _
        // Predicated region
        $region33: #{tpu_custom_call.1} parent=23 // pred_check
          %p213 = pneg %p98
        $region34: #{tpu_custom_call.1} parent=23 // pred_check_branch
          %215 = sbr.rel (%p213) target = $region36
        $region35: #{tpu_custom_call.1} parent=23 // pred_region
          %p216 = scmp.lt.s32.totalorder %s22, 3
          %s217 = scalar_select %p216, %s22, 3
          %s218 = smul.addr %s217, 2
          %s219 = smul.addr %s218, 4
          %s220 = scalar_lea.vmem %s2, %s219
        $region36: #{tpu_custom_call.1} parent=23 // pred_fallthru
          _
      $region24: #{tpu_custom_call.1} parent=5 // pred_fallthru
        _
      %p221 = scmp.le.s32.totalorder 1, %s14
      %p222 = scmp.lt.s32.totalorder %s14, 9
      %p223 = pnand %p221, %p222
      %p224 = pneg %p223
      // Predicated region
      $region37: #{tpu_custom_call.1} parent=5 // pred_check
        _
      $region38: #{tpu_custom_call.1} parent=5 // pred_check_branch
        %226 = sbr.rel (%p223) target = $region40
      $region39: #{tpu_custom_call.1} parent=5 // pred_region
        %s227 = ssub.s32 %s14, 1
        %p228 = scmp.lt.s32.totalorder %s23, 1
        %s229 = scalar_select %p228, %s23, 1
        %s230 = smul.addr %s229, 2
        %s231 = smul.addr %s230, 4
        %s232 = scalar_lea.vmem %s0, %s231
        %p233 = pneg %p52
        %p234 = pneg %p49
        %p235 = scmp.lt.s32.totalorder %s24, 3
        %s236 = scalar_select %p235, %s24, 3
        %s237 = smul.addr %s236, 8
        %s238 = smul.addr %s237, 4
        %s239 = scalar_lea.vmem %s1, %s238
        %p240 = pneg %p78
        %p241 = pneg %p75
        %p242 = scmp.lt.s32.totalorder %s24, 3
        %s243 = scalar_select %p242, %s24, 3
        %s244 = smul.addr %s243, 2
        %s245 = smul.addr %s244, 4
        %s246 = scalar_lea.vmem %s2, %s245
        %p247 = pneg %p104
        %p248 = pneg %p101
        %p249 = pneg %p125
        %p250 = pneg %p122
        %p251 = pneg %p146
        %p252 = pneg %p143
        %p253 = pneg %p172
        %p254 = pneg %p169
        %s255 = sand.u32 %s159, 1
        %s256 = scalar_lea.sflag [#allocation4], %s255
        %s257 = sand.u32 %s159, 1
        %s258 = smul.addr %s257, 16
        %s259 = scalar_lea.vmem [#allocation3], %s258
        %p260 = scmp.lt.s32.totalorder %s23, 1
        %s261 = scalar_select %p260, %s23, 1
        %s262 = smul.addr %s261, 2
        %s263 = smul.addr %s262, 4
        %s264 = scalar_lea.vmem %s0, %s263
        %p265 = scmp.lt.s32.totalorder %s24, 3
        %s266 = scalar_select %p265, %s24, 3
        %s267 = smul.addr %s266, 8
        %s268 = smul.addr %s267, 4
        %s269 = scalar_lea.vmem %s1, %s268
        %p270 = scmp.lt.s32.totalorder %s24, 3
        %s271 = scalar_select %p270, %s24, 3
        %s272 = smul.addr %s271, 2
        %s273 = smul.addr %s272, 4
        %s274 = scalar_lea.vmem %s2, %s273
        %p276 = scmp.eq.s32.totalorder %s24, 0
        // Predicated region
        $region41: #{tpu_custom_call.1} parent=39 // pred_check
          %p277 = pneg %p276
        $region42: #{tpu_custom_call.1} parent=39 // pred_check_branch
          %279 = sbr.rel (%p277) target = $region44
        $region43: #{tpu_custom_call.1} parent=39 // pred_region
          %vm280 = vcmask 523264
          %281 = vst.msk [vmem:[#allocation2] sm:$0xff] %vm280, 0.0
          %282 = vst.msk [vmem:[#allocation2 + $0x8] sm:$0xff] %vm280, 0.0
        $region44: #{tpu_custom_call.1} parent=39 // pred_fallthru
          _
        %v283 = vld [vmem:[%s264] sm:$0xf]
        %v284 = vld [vmem:[%s264 + $0x4] sm:$0xf]
        %v285 = vld [vmem:[%s269] sm:$0xf]
        %v286 = vld [vmem:[%s269 + $0x4] sm:$0xf]
        %v287 = vld [vmem:[%s269 + $0x8] sm:$0xf]
        %v288 = vld [vmem:[%s269 + $0xc] sm:$0xf]
        %v289 = vld [vmem:[%s269 + $0x10] sm:$0xf]
        %v290 = vld [vmem:[%s269 + $0x14] sm:$0xf]
        %v291 = vld [vmem:[%s269 + $0x18] sm:$0xf]
        %v292 = vld [vmem:[%s269 + $0x1c] sm:$0xf]
        %v295 = vunpack.c.l.b16 %v283
        %v296 = vunpack.c.l.b16 %v284
        %v297 = vpack.c.b16 %v296, %v295
        %v306 = vunpack.c.l.b16 %v285
        %v307 = vunpack.c.l.b16 %v286
        %v308 = vunpack.c.l.b16 %v287
        %v309 = vunpack.c.l.b16 %v288
        %v310 = vunpack.c.l.b16 %v289
        %v311 = vunpack.c.l.b16 %v290
        %v312 = vunpack.c.l.b16 %v291
        %v313 = vunpack.c.l.b16 %v292
        %v314 = vpack.c.b16 %v307, %v306
        %v315 = vpack.c.b16 %v309, %v308
        %v316 = vpack.c.b16 %v311, %v310
        %v317 = vpack.c.b16 %v313, %v312
        %vm322 = vcmask 523264
        %v324 = vsel %vm322, %v297, 0
        %326 = vmatprep.subr.bf16.mxu0 0
        %327 = vmatpush1.bf16.msra.mxu0 0
        %328 = vmatprep.subr.bf16.mxu0 0
        %329 = vmatpush1.bf16.msra.mxu0 0
        %330 = vmatprep.subr.bf16.mxu0 0
        %331 = vmatpush1.bf16.msra.mxu0 0
        %332 = vmatprep.subr.bf16.mxu0 0
        %333 = vmatpush1.bf16.msra.mxu0 0
        %334 = vmatprep.subr.bf16.mxu0 0
        %335 = vmatpush1.bf16.msra.mxu0 %v317
        %336 = vmatprep.subr.bf16.mxu0 0
        %337 = vmatpush1.bf16.msra.mxu0 %v316
        %338 = vmatprep.subr.bf16.mxu0 0
        %339 = vmatpush1.bf16.msra.mxu0 %v315
        %340 = vmatprep.subr.bf16.mxu0 0
        %341 = vmatpush1.bf16.msra.mxu0 %v314
        %342 = vmatprep.subr.bf16.mxu0 0
        %343 = vmatpush2.bf16.msra.mxu0 0
        %344 = vmatprep.subr.bf16.mxu0 0
        %345 = vmatpush2.bf16.msra.mxu0 0
        %346 = vmatprep.subr.bf16.mxu0 0
        %347 = vmatpush2.bf16.msra.mxu0 0
        %348 = vmatprep.subr.bf16.mxu0 0
        %349 = vmatpush2.bf16.msra.mxu0 0
        %350 = vmatprep.subr.bf16.mxu0 0
        %351 = vmatpush2.bf16.msra.mxu0 0
        %352 = vmatprep.subr.bf16.mxu0 0
        %353 = vmatpush2.bf16.msra.mxu0 0
        %354 = vmatprep.subr.bf16.mxu0 0
        %355 = vmatpush2.bf16.msra.mxu0 0
        %356 = vmatprep.subr.bf16.mxu0 0
        %357 = vmatpush2.bf16.msra.mxu0 0
        %358 = vmatprep.mubr.bf16.mxu0 0
        %359 = vmatmul.mubr.bf16.gmra.mxu0 %v324
        %v360 = vpop.f32.mrf.mxu0
        %v361 = vadd.f32 0.0, %v360
        %v362 = vpop.f32.mrf.mxu0
        %v363 = vpop.f32.mrf.mxu0
        %v364 = vadd.f32 0.0, %v363
        %v365 = vpop.f32.mrf.mxu0
        %366 = vdwg.mxu0
        %v367 = vld [vmem:[%s3] sm:$0xff]
        %v368 = vld [vmem:[%s3 + $0x8] sm:$0xff]
        %v369 = vld [vmem:[%s4] sm:$0xff]
        %v370 = vld [vmem:[%s4 + $0x8] sm:$0xff]
        %v371 = vmul.f32 %v361, %v367
        %v372 = vmul.f32 %v364, %v368
        %375 = vrot.lane.b32.xlu0 %v369, 8
        %v376 = vpop.permute.xlu0 %375
        %377 = vrot.lane.b32.xlu0 %v370, 8
        %v378 = vpop.permute.xlu0 %377
        %v381 = vmul.f32 %v361, %v376
        %v382 = vmul.f32 %v364, %v378
        %385 = vrot.lane.b32.xlu0 %v381, 120
        %v386 = vpop.permute.xlu0 %385
        %387 = vrot.lane.b32.xlu0 %v382, 120
        %v388 = vpop.permute.xlu0 %387
        %v391 = vsub.f32 %v371, %v386
        %v392 = vsub.f32 %v372, %v388
        %v393 = vmul.f32 %v361, %v369
        %v394 = vmul.f32 %v364, %v370
        %397 = vrot.lane.b32.xlu0 %v367, 8
        %v398 = vpop.permute.xlu0 %397
        %399 = vrot.lane.b32.xlu0 %v368, 8
        %v400 = vpop.permute.xlu0 %399
        %v403 = vmul.f32 %v361, %v398
        %v404 = vmul.f32 %v364, %v400
        %407 = vrot.lane.b32.xlu0 %v403, 120
        %v408 = vpop.permute.xlu0 %407
        %409 = vrot.lane.b32.xlu0 %v404, 120
        %v410 = vpop.permute.xlu0 %409
        %v413 = vadd.f32 %v393, %v408
        %v414 = vadd.f32 %v394, %v410
        %417 = vrot.lane.b32.xlu0 %v413, 8
        %v418 = vpop.permute.xlu0 %417
        %419 = vrot.lane.b32.xlu0 %v414, 8
        %v420 = vpop.permute.xlu0 %419
        %vm423 = vcmask 64512
        %v424 = vsel %vm423, %v391, %v418
        %v425 = vsel %vm423, %v392, %v420
        %v426 = vpack.c.bf16 %v425, %v424
        %427 = vrot.lane.b32.xlu0 %v367, 16
        %v428 = vpop.permute.xlu0 %427
        %429 = vrot.lane.b32.xlu0 %v368, 16
        %v430 = vpop.permute.xlu0 %429
        %v433 = vmul.f32 %v361, %v428
        %v434 = vmul.f32 %v364, %v430
        %435 = vrot.lane.b32.xlu0 %v369, 24
        %v436 = vpop.permute.xlu0 %435
        %437 = vrot.lane.b32.xlu0 %v370, 24
        %v438 = vpop.permute.xlu0 %437
        %v441 = vmul.f32 %v361, %v436
        %v442 = vmul.f32 %v364, %v438
        %445 = vrot.lane.b32.xlu0 %v441, 120
        %v446 = vpop.permute.xlu0 %445
        %447 = vrot.lane.b32.xlu0 %v442, 120
        %v448 = vpop.permute.xlu0 %447
        %v451 = vsub.f32 %v433, %v446
        %v452 = vsub.f32 %v434, %v448
        %453 = vrot.lane.b32.xlu0 %v369, 16
        %v454 = vpop.permute.xlu0 %453
        %455 = vrot.lane.b32.xlu0 %v370, 16
        %v456 = vpop.permute.xlu0 %455
        %v459 = vmul.f32 %v361, %v454
        %v460 = vmul.f32 %v364, %v456
        %461 = vrot.lane.b32.xlu0 %v367, 24
        %v462 = vpop.permute.xlu0 %461
        %463 = vrot.lane.b32.xlu0 %v368, 24
        %v464 = vpop.permute.xlu0 %463
        %v467 = vmul.f32 %v361, %v462
        %v468 = vmul.f32 %v364, %v464
        %471 = vrot.lane.b32.xlu0 %v467, 120
        %v472 = vpop.permute.xlu0 %471
        %473 = vrot.lane.b32.xlu0 %v468, 120
        %v474 = vpop.permute.xlu0 %473
        %v477 = vadd.f32 %v459, %v472
        %v478 = vadd.f32 %v460, %v474
        %481 = vrot.lane.b32.xlu0 %v451, 112
        %v482 = vpop.permute.xlu0 %481
        %483 = vrot.lane.b32.xlu0 %v452, 112
        %v484 = vpop.permute.xlu0 %483
        %489 = vrot.lane.b32.xlu0 %v477, 120
        %v490 = vpop.permute.xlu0 %489
        %491 = vrot.lane.b32.xlu0 %v478, 120
        %v492 = vpop.permute.xlu0 %491
        %v495 = vsel %vm423, %v482, %v490
        %v496 = vsel %vm423, %v484, %v492
        %v497 = vpack.c.bf16 %v496, %v495
        %vm498 = vcmask 130048
        %v500 = vsel %vm498, %v426, 0
        %v503 = vsel %vm498, %v497, 0
        %505 = vmatprep.subr.bf16.mxu0 0
        %506 = vmatpush1.bf16.xpose.msra.mxu0 0
        %507 = vmatprep.subr.bf16.mxu0 0
        %508 = vmatpush1.bf16.xpose.msra.mxu0 0
        %509 = vmatprep.subr.bf16.mxu0 0
        %510 = vmatpush1.bf16.xpose.msra.mxu0 0
        %511 = vmatprep.subr.bf16.mxu0 0
        %512 = vmatpush1.bf16.xpose.msra.mxu0 0
        %513 = vmatprep.subr.bf16.mxu0 0
        %514 = vmatpush1.bf16.xpose.msra.mxu0 0
        %515 = vmatprep.subr.bf16.mxu0 0
        %516 = vmatpush1.bf16.xpose.msra.mxu0 0
        %517 = vmatprep.subr.bf16.mxu0 0
        %518 = vmatpush1.bf16.xpose.msra.mxu0 0
        %519 = vmatprep.subr.bf16.mxu0 0
        %520 = vmatpush1.bf16.xpose.msra.mxu0 %v503
        %521 = vmatprep.subr.bf16.mxu0 0
        %522 = vmatpush2.bf16.xpose.msra.mxu0 0
        %523 = vmatprep.subr.bf16.mxu0 0
        %524 = vmatpush2.bf16.xpose.msra.mxu0 0
        %525 = vmatprep.subr.bf16.mxu0 0
        %526 = vmatpush2.bf16.xpose.msra.mxu0 0
        %527 = vmatprep.subr.bf16.mxu0 0
        %528 = vmatpush2.bf16.xpose.msra.mxu0 0
        %529 = vmatprep.subr.bf16.mxu0 0
        %530 = vmatpush2.bf16.xpose.msra.mxu0 0
        %531 = vmatprep.subr.bf16.mxu0 0
        %532 = vmatpush2.bf16.xpose.msra.mxu0 0
        %533 = vmatprep.subr.bf16.mxu0 0
        %534 = vmatpush2.bf16.xpose.msra.mxu0 0
        %535 = vmatprep.subr.bf16.mxu0 0
        %536 = vmatpush2.bf16.xpose.msra.mxu0 0
        %537 = vmatprep.mubr.bf16.mxu0 0
        %538 = vmatmul.mubr.bf16.gmra.mxu0 %v500
        %v539 = vpop.f32.mrf.mxu0
        %v540 = vadd.f32 0.0, %v539
        %v541 = vpop.f32.mrf.mxu0
        %v542 = vpop.f32.mrf.mxu0
        %v543 = vadd.f32 0.0, %v542
        %v544 = vpop.f32.mrf.mxu0
        %545 = vdwg.mxu0
        %v546 = vlaneseq
        %v547 = vshrl.u32 %v546, 7
        %v548 = vadd.s32 %v547, 8
        %v549 = vlaneseq
        %v550 = vand.u32 %v549, 127
        %vm551 = vcmp.ge.s32.totalorder %v547, %v550
        %vm552 = vcmp.ge.s32.totalorder %v548, %v550
        %v553 = vsel %vm551, %v540, -1e+30
        %v554 = vsel %vm552, %v543, -1e+30
        %v555 = vsel %vm498, %v553, -inf
        %556 = vmax.xlane.f32.xlu0 %v555
        %v557 = vpop.xlane.xlu0 %556
        %v558 = vsel %vm498, %v554, -inf
        %559 = vmax.xlane.f32.xlu0 %v558
        %v560 = vpop.xlane.xlu0 %559
        %v561 = vsub.f32 %v553, %v557
        %v562 = vsub.f32 %v554, %v560
        %v563 = vmul.f32 %v561, 1.442695
        %v564 = vpow.pop %v563
        %v565 = vmul.f32 %v562, 1.442695
        %v566 = vpow.pop %v565
        %v567 = vsel %vm498, %v564, 0.0
        %568 = vadd.xlane.f32.xlu0 %v567
        %v569 = vpop.xlane.xlu0 %568
        %v570 = vsel %vm498, %v566, 0.0
        %571 = vadd.xlane.f32.xlu0 %v570
        %v572 = vpop.xlane.xlu0 %571
        %v573 = vrcp.pop %v569
        %v574 = vrcp.pop %v572
        %v575 = vmul.f32 %v564, %v573
        %v576 = vmul.f32 %v566, %v574
        %v577 = vpack.c.bf16 %v576, %v575
        %v578 = vpack.c.bf16 %v364, %v361
        %580 = vrot.lane.b32.xlu0 %v578, 96
        %v581 = vpop.permute.xlu0 %580
        %v584 = vsel %vm498, %v577, 0
        %586 = vmatprep.subr.bf16.mxu0 0
        %587 = vmatpush1.bf16.msra.mxu0 0
        %588 = vmatprep.subr.bf16.mxu0 0
        %589 = vmatpush1.bf16.msra.mxu0 0
        %590 = vmatprep.subr.bf16.mxu0 0
        %591 = vmatpush1.bf16.msra.mxu0 0
        %592 = vmatprep.subr.bf16.mxu0 0
        %593 = vmatpush1.bf16.msra.mxu0 0
        %594 = vmatprep.subr.bf16.mxu0 0
        %595 = vmatpush1.bf16.msra.mxu0 0
        %596 = vmatprep.subr.bf16.mxu0 0
        %597 = vmatpush1.bf16.msra.mxu0 0
        %598 = vmatprep.subr.bf16.mxu0 0
        %599 = vmatpush1.bf16.msra.mxu0 0
        %600 = vmatprep.subr.bf16.mxu0 0
        %601 = vmatpush1.bf16.msra.mxu0 %v581
        %602 = vmatprep.subr.bf16.mxu0 0
        %603 = vmatpush2.bf16.msra.mxu0 0
        %604 = vmatprep.subr.bf16.mxu0 0
        %605 = vmatpush2.bf16.msra.mxu0 0
        %606 = vmatprep.subr.bf16.mxu0 0
        %607 = vmatpush2.bf16.msra.mxu0 0
        %608 = vmatprep.subr.bf16.mxu0 0
        %609 = vmatpush2.bf16.msra.mxu0 0
        %610 = vmatprep.subr.bf16.mxu0 0
        %611 = vmatpush2.bf16.msra.mxu0 0
        %612 = vmatprep.subr.bf16.mxu0 0
        %613 = vmatpush2.bf16.msra.mxu0 0
        %614 = vmatprep.subr.bf16.mxu0 0
        %615 = vmatpush2.bf16.msra.mxu0 0
        %616 = vmatprep.subr.bf16.mxu0 0
        %617 = vmatpush2.bf16.msra.mxu0 0
        %618 = vmatprep.mubr.bf16.mxu0 0
        %619 = vmatmul.mubr.bf16.gmra.mxu0 %v584
        %v620 = vpop.f32.mrf.mxu0
        %v621 = vadd.f32 0.0, %v620
        %v622 = vpop.f32.mrf.mxu0
        %v623 = vpop.f32.mrf.mxu0
        %v624 = vadd.f32 0.0, %v623
        %v625 = vpop.f32.mrf.mxu0
        %626 = vdwg.mxu0
        %v627 = vld [vmem:[#allocation2] sm:$0xff]
        %v628 = vld [vmem:[#allocation2 + $0x8] sm:$0xff]
        %v629 = vpack.c.bf16 %v624, %v621
        %v630 = vld [vmem:[%s274] sm:$0xf]
        %v631 = vld [vmem:[%s274 + $0x4] sm:$0xf]
        %v634 = vunpack.c.l.b16 %v630
        %v635 = vunpack.c.l.b16 %v631
        %v636 = vpack.c.b16 %v635, %v634
        %v639 = vsel %vm498, %v629, 0
        %641 = vmatprep.subr.bf16.mxu0 0
        %642 = vmatpush1.bf16.msra.mxu0 0
        %643 = vmatprep.subr.bf16.mxu0 0
        %644 = vmatpush1.bf16.msra.mxu0 0
        %645 = vmatprep.subr.bf16.mxu0 0
        %646 = vmatpush1.bf16.msra.mxu0 0
        %647 = vmatprep.subr.bf16.mxu0 0
        %648 = vmatpush1.bf16.msra.mxu0 0
        %649 = vmatprep.subr.bf16.mxu0 0
        %650 = vmatpush1.bf16.msra.mxu0 0
        %651 = vmatprep.subr.bf16.mxu0 0
        %652 = vmatpush1.bf16.msra.mxu0 0
        %653 = vmatprep.subr.bf16.mxu0 0
        %654 = vmatpush1.bf16.msra.mxu0 0
        %655 = vmatprep.subr.bf16.mxu0 0
        %656 = vmatpush1.bf16.msra.mxu0 %v636
        %657 = vmatprep.subr.bf16.mxu0 0
        %658 = vmatpush2.bf16.msra.mxu0 0
        %659 = vmatprep.subr.bf16.mxu0 0
        %660 = vmatpush2.bf16.msra.mxu0 0
        %661 = vmatprep.subr.bf16.mxu0 0
        %662 = vmatpush2.bf16.msra.mxu0 0
        %663 = vmatprep.subr.bf16.mxu0 0
        %664 = vmatpush2.bf16.msra.mxu0 0
        %665 = vmatprep.subr.bf16.mxu0 0
        %666 = vmatpush2.bf16.msra.mxu0 0
        %667 = vmatprep.subr.bf16.mxu0 0
        %668 = vmatpush2.bf16.msra.mxu0 0
        %669 = vmatprep.subr.bf16.mxu0 0
        %670 = vmatpush2.bf16.msra.mxu0 0
        %671 = vmatprep.subr.bf16.mxu0 0
        %672 = vmatpush2.bf16.msra.mxu0 0
        %673 = vmatprep.mubr.bf16.mxu0 0
        %674 = vmatmul.mubr.bf16.gmra.mxu0 %v639
        %v675 = vpop.f32.mrf.mxu0
        %v676 = vadd.f32 0.0, %v675
        %v677 = vpop.f32.mrf.mxu0
        %v678 = vpop.f32.mrf.mxu0
        %v679 = vadd.f32 0.0, %v678
        %v680 = vpop.f32.mrf.mxu0
        %681 = vdwg.mxu0
        %v682 = vadd.f32 %v627, %v676
        %v683 = vadd.f32 %v628, %v679
        %684 = vst.msk [vmem:[#allocation2] sm:$0xff] %vm322, %v682
        %685 = vst.msk [vmem:[#allocation2 + $0x8] sm:$0xff] %vm322, %v683
        %p686 = scmp.eq.s32.totalorder %s24, 3
        // Predicated region
        $region45: #{tpu_custom_call.1} parent=39 // pred_check
          %p687 = pneg %p686
        $region46: #{tpu_custom_call.1} parent=39 // pred_check_branch
          %689 = sbr.rel (%p687) target = $region48
        $region47: #{tpu_custom_call.1} parent=39 // pred_region
          %v690 = vld [vmem:[#allocation2] sm:$0xff]
          %v691 = vld [vmem:[#allocation2 + $0x8] sm:$0xff]
          %692 = vst.msk [vmem:[%s259] sm:$0xff] %vm322, %v690
          %693 = vst.msk [vmem:[%s259 + $0x8] sm:$0xff] %vm322, %v691
        $region48: #{tpu_custom_call.1} parent=39 // pred_fallthru
          _
        %s694 = sand.u32 %s159, 1
        %s695 = scalar_lea.sflag [#allocation4], %s694
        %s696 = sand.u32 %s159, 1
        %s697 = smul.addr %s696, 16
        %s698 = scalar_lea.vmem [#allocation3], %s697
        // Predicated region
        $region49: #{tpu_custom_call.1} parent=39 // pred_check
          %p699 = pneg %p169
        $region50: #{tpu_custom_call.1} parent=39 // pred_check_branch
          %701 = sbr.rel (%p699) target = $region52
        $region51: #{tpu_custom_call.1} parent=39 // pred_region
          %s703 = ssub.s32 256, 256
          %704 = vsyncadd %s695, %s703
          %s705 = smul.addr %s23, 2
          %s706 = smul.addr %s705, 128
          %s707 = scalar_lea.hbm %s5, %s706
          %s708 = sshll.u32 %s698, 4
          %s709 = int_to_ptr.vmem [resolvable:$true] %s708
          %714 = dma.vmem_to_hbm [thread:$0]  %s709, 256, %s707, %s695, 128, 128, 8
        $region52: #{tpu_custom_call.1} parent=39 // pred_fallthru
          _
      $region40: #{tpu_custom_call.1} parent=5 // pred_fallthru
        _
      %p715 = scmp.le.s32.totalorder 2, %s14
      // Predicated region
      $region53: #{tpu_custom_call.1} parent=5 // pred_check
        %p716 = pneg %p715
      $region54: #{tpu_custom_call.1} parent=5 // pred_check_branch
        %718 = sbr.rel (%p716) target = $region56
      $region55: #{tpu_custom_call.1} parent=5 // pred_region
        %s719 = ssub.s32 %s14, 2
        // Predicated region
        $region57: #{tpu_custom_call.1} parent=55 // pred_check
          %p720 = pneg %p175
        $region58: #{tpu_custom_call.1} parent=55 // pred_check_branch
          %722 = sbr.rel (%p720) target = $region60
        $region59: #{tpu_custom_call.1} parent=55 // pred_region
          %s723 = sand.u32 %s160, 1
          %s724 = scalar_lea.sflag [#allocation4], %s723
          %s725 = sand.u32 %s160, 1
          %s726 = smul.addr %s725, 16
          %s727 = scalar_lea.vmem [#allocation3], %s726
          %728 = dma.done %s724, 256
        $region60: #{tpu_custom_call.1} parent=55 // pred_fallthru
          _
      $region56: #{tpu_custom_call.1} parent=5 // pred_fallthru
        _
    $region6: #{tpu_custom_call.1} parent=1 // loop_footer
      %s18 = sadd.s32 1, %s14
    $region7: #{tpu_custom_call.1} parent=1 // loop_footer_branch
      %13 = sbr.rel target = $region3
    $region8: #{tpu_custom_call.1} parent=1 // loop_exit
      _
    %729 = vsyncpa [#allocation4], 1
    %s730 = scalar_lea.sflag [#allocation4], 1
    %731 = vsyncpa %s730, 1

</llo_original>
